<compile_context>
chip_gen: v6e
topology: v6e:2x2x1
jax: 0.10.0
libtpu: 0.0.40
codegen_flags: <defaults>
</compile_context>

<pallas_src>
import jax
import jax.numpy as jnp
from jax.experimental import pallas as pl
from jax.experimental.pallas import tpu as pltpu

N_KERNELS = 5
MUL_FACTOR = 2.0
# bandwidth_multipliers = mul_factor ** (arange(n_kernels) - n_kernels // 2)
BANDWIDTH_MULTIPLIERS = tuple(
    float(MUL_FACTOR ** (i - N_KERNELS // 2)) for i in range(N_KERNELS)
)


def _round_up(a: int, b: int) -> int:
    return (a + b - 1) // b * b


def _mmd_tile_kernel(ti_ref, tj_ref, coef_ref,
                     zi_ref, zj_ref, sqi_ref, sqj_ref, wi_ref, wj_ref,
                     out_ref):
    """One (blk, blk) tile of the Gram / RBF-mixture / weighted-sum computation.

    Accumulates  scale * sum_ij w_i * w_j * K_ij  into the scalar SMEM output,
    where scale = 2 for strictly-upper-triangle tiles (symmetry of K).
    """
    s = pl.program_id(0)

    @pl.when(s == 0)
    def _():
        out_ref[0, 0] = 0.0

    zi = zi_ref[...]                                     # (blk, Dp) f32
    zj = zj_ref[...]                                     # (blk, Dp) f32

    # Gram tile on the MXU: G[a, b] = <zi_a, zj_b>
    g = jax.lax.dot_general(
        zi, zj, (((1,), (1,)), ((), ())), preferred_element_type=jnp.float32
    )                                                    # (blk, blk)

    # Squared norms precomputed in the wrapper: column for i, row for j.
    l2 = jnp.maximum(sqi_ref[...] + sqj_ref[...] - 2.0 * g, 0.0)

    # RBF mixture via one exp + repeated squaring:
    #   exp(-l2/(bw*m)) = base^(4/m),  base = exp(-l2/(4*bw)) = exp(coef * l2)
    base = jnp.exp(l2 * coef_ref[0])
    b2 = base * base
    b4 = b2 * b2
    b8 = b4 * b4
    b16 = b8 * b8
    k = base + b2 + b4 + b8 + b16                        # (blk, blk)

    # Weighted reduction (pad rows carry w = 0 and contribute nothing):
    #   sum_ij wi_i * wj_j * K_ij  =  wi . (K @ wj)
    row_sum = jnp.sum(k * wj_ref[...], axis=1, keepdims=True)   # (blk, 1)
    partial_sum = jnp.sum(row_sum * wi_ref[...])

    scale = jnp.where(ti_ref[s] == tj_ref[s], 1.0, 2.0)  # double off-diag tiles
    out_ref[0, 0] += partial_sum * scale


def mmd_loss(x, y, *, tile: int = 128):
    """MMDLoss.forward(X, Y, device) equivalent (weight=None branch)."""
    n_x, d = x.shape
    n_y = y.shape[0]
    n = n_x + n_y

    z = jnp.concatenate(
        [x.astype(jnp.float32), y.astype(jnp.float32)], axis=0
    )                                                    # (N, D)

    # Closed-form bandwidth (O(N*D)): sum_ij ||zi - zj||^2
    #   = 2*N*sum_i ||z_i||^2 - 2*||sum_i z_i||^2
    sq = jnp.sum(z * z, axis=1)                          # (N,) — reused below
    col_sum = jnp.sum(z, axis=0)
    sum_l2 = 2.0 * n * jnp.sum(sq) - 2.0 * jnp.sum(col_sum * col_sum)
    bw = sum_l2 / float(n * n - n)
    coef = (-1.0 / (4.0 * bw)).reshape(1).astype(jnp.float32)

    # Tile size: either the whole (8-aligned) problem in one tile, or a
    # multiple of 128 so the (1, blk) row-vector side inputs stay (8,128)-legal.
    if n <= tile:
        blk = _round_up(n, 8)
    else:
        blk = _round_up(tile, 128)
    n_pad = _round_up(n, blk)
    d_pad = _round_up(d, 128)

    z_pad = jnp.pad(z, ((0, n_pad - n), (0, d_pad - d)))
    sq_pad = jnp.pad(sq, (0, n_pad - n)).astype(jnp.float32)

    # Weight vector: +1/n_x for X rows, -1/n_y for Y rows, 0 for pad rows.
    # sum_ij w_i w_j K_ij == mean(K_XX) - 2*mean(K_XY) + mean(K_YY).
    w = jnp.concatenate([
        jnp.full((n_x,), 1.0 / n_x, jnp.float32),
        jnp.full((n_y,), -1.0 / n_y, jnp.float32),
        jnp.zeros((n_pad - n,), jnp.float32),
    ])

    sq_col = sq_pad.reshape(n_pad, 1)
    sq_row = sq_pad.reshape(1, n_pad)
    w_col = w.reshape(n_pad, 1)
    w_row = w.reshape(1, n_pad)

    # Upper-triangle tile list (ti <= tj), i-major so zi is re-used across steps.
    nt = n_pad // blk
    pairs = [(i, j) for i in range(nt) for j in range(i, nt)]
    ti_ids = jnp.asarray([p[0] for p in pairs], jnp.int32)
    tj_ids = jnp.asarray([p[1] for p in pairs], jnp.int32)
    num_steps = len(pairs)

    grid_spec = pltpu.PrefetchScalarGridSpec(
        num_scalar_prefetch=2,          # ti_ids, tj_ids drive the index maps
        grid=(num_steps,),
        in_specs=[
            pl.BlockSpec(memory_space=pltpu.MemorySpace.SMEM),           # coef
            pl.BlockSpec((blk, d_pad), lambda s, ti, tj: (ti[s], 0)),    # z rows i
            pl.BlockSpec((blk, d_pad), lambda s, ti, tj: (tj[s], 0)),    # z rows j
            pl.BlockSpec((blk, 1), lambda s, ti, tj: (ti[s], 0)),        # sq_i col
            pl.BlockSpec((1, blk), lambda s, ti, tj: (0, tj[s])),        # sq_j row
            pl.BlockSpec((blk, 1), lambda s, ti, tj: (ti[s], 0)),        # w_i col
            pl.BlockSpec((1, blk), lambda s, ti, tj: (0, tj[s])),        # w_j row
        ],
        out_specs=pl.BlockSpec((1, 1), lambda s, ti, tj: (0, 0),
                               memory_space=pltpu.MemorySpace.SMEM),
    )

    # Advisory cost hint for the XLA scheduler.
    flops = num_steps * (2 * blk * blk * d_pad + 12 * blk * blk)
    transcendentals = num_steps * blk * blk
    bytes_accessed = num_steps * (2 * blk * d_pad + 4 * blk) * 4 + 8

    out = pl.pallas_call(
        _mmd_tile_kernel,
        out_shape=jax.ShapeDtypeStruct((1, 1), jnp.float32),
        grid_spec=grid_spec,
        compiler_params=pltpu.CompilerParams(
            dimension_semantics=("arbitrary",)),   # scalar output revisited
        cost_estimate=pl.CostEstimate(
            flops=flops,
            transcendentals=transcendentals,
            bytes_accessed=bytes_accessed),
    )(ti_ids, tj_ids, coef, z_pad, z_pad, sq_col, sq_row, w_col, w_row)

    return out[0, 0]


def mmd_loss_ref(x, y):
    """Pure-JAX reference (mirrors the PyTorch module, weight=None branch)."""
    z = jnp.concatenate([x, y], axis=0).astype(jnp.float32)
    n = z.shape[0]
    d2 = jnp.sum((z[:, None, :] - z[None, :, :]) ** 2, axis=-1)
    bw = jnp.sum(d2) / (n * n - n)
    mults = jnp.asarray(BANDWIDTH_MULTIPLIERS, dtype=jnp.float32)
    k = jnp.exp(-d2[None, ...] / (bw * mults)[:, None, None]).sum(axis=0)
    nx = x.shape[0]
    return (
        jnp.mean(k[:nx, :nx]) - 2.0 * jnp.mean(k[:nx, nx:]) + jnp.mean(k[nx:, nx:])
    )


if __name__ == "__main__":
    key = jax.random.PRNGKey(0)
    kx, ky, kx2, ky2 = jax.random.split(key, 4)

    # Case 1: small, single-tile shapes (samples x features).
    n_x, n_y, d = 8, 8, 32
    X = jax.random.normal(kx, (n_x, d), dtype=jnp.float32)
    Y = jax.random.normal(ky, (n_y, d), dtype=jnp.float32) + 0.5

    loss = jax.block_until_ready(mmd_loss(X, Y))
    ref = jax.block_until_ready(mmd_loss_ref(X, Y))
    assert jnp.isfinite(loss), "kernel produced non-finite output"
    assert jnp.allclose(loss, ref, rtol=1e-4, atol=1e-5), (loss, ref)

    # Case 2: unaligned shapes + multi-tile grid (exercises row/feature padding,
    # the upper-triangle tile enumeration and the symmetry doubling).
    n_x2, n_y2, d2 = 70, 75, 40      # n = 145 -> blk = 128, n_pad = 256, 3 tile pairs
    X2 = jax.random.normal(kx2, (n_x2, d2), dtype=jnp.float32)
    Y2 = jax.random.normal(ky2, (n_y2, d2), dtype=jnp.float32) - 0.25

    loss2 = jax.block_until_ready(mmd_loss(X2, Y2, tile=128))
    ref2 = jax.block_until_ready(mmd_loss_ref(X2, Y2))
    assert jnp.isfinite(loss2), "kernel produced non-finite output (case 2)"
    assert jnp.allclose(loss2, ref2, rtol=1e-4, atol=1e-5), (loss2, ref2)

    print("KERNEL_OK")
</pallas_src>

<mosaic_0001>
module attributes {stable_mosaic.version = 11 : i64} {
  func.func @_mmd_tile_kernel(%arg0: i32, %arg1: memref<1xi32, #tpu.memory_space<smem>>, %arg2: memref<1xi32, #tpu.memory_space<smem>>, %arg3: memref<1xf32, #tpu.memory_space<smem>>, %arg4: memref<16x128xf32, #tpu.memory_space<vmem>>, %arg5: memref<16x128xf32, #tpu.memory_space<vmem>>, %arg6: memref<16x1xf32, #tpu.memory_space<vmem>>, %arg7: memref<1x16xf32, #tpu.memory_space<vmem>>, %arg8: memref<16x1xf32, #tpu.memory_space<vmem>>, %arg9: memref<1x16xf32, #tpu.memory_space<vmem>>, %arg10: memref<1x1xf32, #tpu.memory_space<smem>>) attributes {dimension_semantics = [#tpu.dimension_semantics<arbitrary>], iteration_bounds = array<i64: 1>, scalar_prefetch = 2 : i64, scratch_operands = 0 : i64, tpu.core_type = #tpu.core_type<tc>, window_params = [{transform_indices = @transform_0, window_bounds = array<i64: 1>}, {transform_indices = @transform_1, window_bounds = array<i64: 16, 128>}, {transform_indices = @transform_2, window_bounds = array<i64: 16, 128>}, {transform_indices = @transform_3, window_bounds = array<i64: 16, 1>}, {transform_indices = @transform_4, window_bounds = array<i64: 1, 16>}, {transform_indices = @transform_5, window_bounds = array<i64: 16, 1>}, {transform_indices = @transform_6, window_bounds = array<i64: 1, 16>}, {transform_indices = @transform_7, window_bounds = array<i64: 1, 1>}]} {
    %c0_i32 = arith.constant 0 : i32
    %0 = arith.cmpi eq, %arg0, %c0_i32 : i32
    %1 = arith.extui %0 : i1 to i32
    %c0_i32_0 = arith.constant 0 : i32
    %2 = arith.cmpi ne, %1, %c0_i32_0 : i32
    scf.if %2 {
      %cst_23 = arith.constant 0.000000e+00 : f32
      %c0_24 = arith.constant 0 : index
      %c0_25 = arith.constant 0 : index
      %49 = memref.load %arg10[%c0_24, %c0_25] : memref<1x1xf32, #tpu.memory_space<smem>>
      memref.store %cst_23, %arg10[%c0_24, %c0_25] : memref<1x1xf32, #tpu.memory_space<smem>>
    } else {
    }
    %c0 = arith.constant 0 : index
    %c0_1 = arith.constant 0 : index
    %3 = vector.load %arg4[%c0, %c0_1] : memref<16x128xf32, #tpu.memory_space<vmem>>, vector<16x128xf32>
    %c0_2 = arith.constant 0 : index
    %c0_3 = arith.constant 0 : index
    %4 = vector.load %arg5[%c0_2, %c0_3] : memref<16x128xf32, #tpu.memory_space<vmem>>, vector<16x128xf32>
    %cst = arith.constant dense<0.000000e+00> : vector<16x16xf32>
    %5 = tpu.matmul %3, %4, %cst {dimension_numbers = #tpu.dot_dimension_numbers<[1], [1], [0], [0], [0, 0, 1, 0], [], []>} : vector<16x128xf32>, vector<16x128xf32>, vector<16x16xf32> -> vector<16x16xf32>
    %c0_4 = arith.constant 0 : index
    %c0_5 = arith.constant 0 : index
    %6 = vector.load %arg6[%c0_4, %c0_5] : memref<16x1xf32, #tpu.memory_space<vmem>>, vector<16x1xf32>
    %c0_6 = arith.constant 0 : index
    %c0_7 = arith.constant 0 : index
    %7 = vector.load %arg7[%c0_6, %c0_7] : memref<1x16xf32, #tpu.memory_space<vmem>>, vector<1x16xf32>
    %8 = vector.broadcast %6 : vector<16x1xf32> to vector<16x16xf32>
    %9 = vector.broadcast %7 : vector<1x16xf32> to vector<16x16xf32>
    %10 = arith.addf %8, %9 : vector<16x16xf32>
    %cst_8 = arith.constant 2.000000e+00 : f32
    %11 = vector.broadcast %cst_8 : f32 to vector<16x16xf32>
    %12 = arith.mulf %11, %5 : vector<16x16xf32>
    %13 = arith.subf %10, %12 : vector<16x16xf32>
    %cst_9 = arith.constant 0.000000e+00 : f32
    %14 = vector.broadcast %cst_9 : f32 to vector<16x16xf32>
    %15 = arith.maximumf %13, %14 : vector<16x16xf32>
    %c0_10 = arith.constant 0 : index
    %16 = memref.load %arg3[%c0_10] : memref<1xf32, #tpu.memory_space<smem>>
    %17 = vector.broadcast %16 : f32 to vector<16x16xf32>
    %18 = arith.mulf %15, %17 : vector<16x16xf32>
    %19 = math.exp %18 : vector<16x16xf32>
    %20 = arith.mulf %19, %19 : vector<16x16xf32>
    %21 = arith.mulf %20, %20 : vector<16x16xf32>
    %22 = arith.mulf %21, %21 : vector<16x16xf32>
    %23 = arith.mulf %22, %22 : vector<16x16xf32>
    %24 = arith.addf %19, %20 : vector<16x16xf32>
    %25 = arith.addf %24, %21 : vector<16x16xf32>
    %26 = arith.addf %25, %22 : vector<16x16xf32>
    %27 = arith.addf %26, %23 : vector<16x16xf32>
    %c0_11 = arith.constant 0 : index
    %c0_12 = arith.constant 0 : index
    %28 = vector.load %arg9[%c0_11, %c0_12] : memref<1x16xf32, #tpu.memory_space<vmem>>, vector<1x16xf32>
    %29 = vector.broadcast %28 : vector<1x16xf32> to vector<16x16xf32>
    %30 = arith.mulf %27, %29 : vector<16x16xf32>
    %cst_13 = arith.constant dense<0.000000e+00> : vector<16xf32>
    %31 = vector.multi_reduction <add>, %30, %cst_13 [1] : vector<16x16xf32> to vector<16xf32>
    %32 = vector.shape_cast %31 : vector<16xf32> to vector<16x1xf32>
    %c0_14 = arith.constant 0 : index
    %c0_15 = arith.constant 0 : index
    %33 = vector.load %arg8[%c0_14, %c0_15] : memref<16x1xf32, #tpu.memory_space<vmem>>, vector<16x1xf32>
    %34 = arith.mulf %32, %33 : vector<16x1xf32>
    %35 = vector.shape_cast %34 : vector<16x1xf32> to vector<1x16x1xf32>
    %cst_16 = arith.constant dense<0.000000e+00> : vector<1xf32>
    %36 = vector.multi_reduction <add>, %35, %cst_16 [1, 2] : vector<1x16x1xf32> to vector<1xf32>
    %37 = vector.shape_cast %36 : vector<1xf32> to vector<1x1x1xf32>
    %38 = vector.extract %37[0, 0, 0] : f32 from vector<1x1x1xf32>
    %39 = arith.index_cast %arg0 : i32 to index
    %40 = memref.load %arg1[%39] : memref<1xi32, #tpu.memory_space<smem>>
    %41 = arith.index_cast %arg0 : i32 to index
    %42 = memref.load %arg2[%41] : memref<1xi32, #tpu.memory_space<smem>>
    %43 = arith.cmpi eq, %40, %42 : i32
    %cst_17 = arith.constant 1.000000e+00 : f32
    %cst_18 = arith.constant 2.000000e+00 : f32
    %44 = arith.select %43, %cst_17, %cst_18 : f32
    %c0_19 = arith.constant 0 : index
    %c0_20 = arith.constant 0 : index
    %45 = memref.load %arg10[%c0_19, %c0_20] : memref<1x1xf32, #tpu.memory_space<smem>>
    %46 = arith.mulf %38, %44 : f32
    %47 = arith.addf %45, %46 : f32
    %c0_21 = arith.constant 0 : index
    %c0_22 = arith.constant 0 : index
    %48 = memref.load %arg10[%c0_21, %c0_22] : memref<1x1xf32, #tpu.memory_space<smem>>
    memref.store %47, %arg10[%c0_21, %c0_22] : memref<1x1xf32, #tpu.memory_space<smem>>
    return
  }
  func.func @transform_0(%arg0: i32, %arg1: memref<1xi32, #tpu.memory_space<smem>>, %arg2: memref<1xi32, #tpu.memory_space<smem>>) -> i32 {
    %c0_i32 = arith.constant 0 : i32
    %c0_i32_0 = arith.constant 0 : i32
    return %c0_i32 : i32
  }
  func.func @transform_1(%arg0: i32, %arg1: memref<1xi32, #tpu.memory_space<smem>>, %arg2: memref<1xi32, #tpu.memory_space<smem>>) -> (i32, i32) {
    %0 = arith.index_cast %arg0 : i32 to index
    %1 = memref.load %arg1[%0] : memref<1xi32, #tpu.memory_space<smem>>
    %c0_i32 = arith.constant 0 : i32
    %c0_i32_0 = arith.constant 0 : i32
    return %1, %c0_i32 : i32, i32
  }
  func.func @transform_2(%arg0: i32, %arg1: memref<1xi32, #tpu.memory_space<smem>>, %arg2: memref<1xi32, #tpu.memory_space<smem>>) -> (i32, i32) {
    %0 = arith.index_cast %arg0 : i32 to index
    %1 = memref.load %arg2[%0] : memref<1xi32, #tpu.memory_space<smem>>
    %c0_i32 = arith.constant 0 : i32
    %c0_i32_0 = arith.constant 0 : i32
    return %1, %c0_i32 : i32, i32
  }
  func.func @transform_3(%arg0: i32, %arg1: memref<1xi32, #tpu.memory_space<smem>>, %arg2: memref<1xi32, #tpu.memory_space<smem>>) -> (i32, i32) {
    %0 = arith.index_cast %arg0 : i32 to index
    %1 = memref.load %arg1[%0] : memref<1xi32, #tpu.memory_space<smem>>
    %c0_i32 = arith.constant 0 : i32
    %c0_i32_0 = arith.constant 0 : i32
    return %1, %c0_i32 : i32, i32
  }
  func.func @transform_4(%arg0: i32, %arg1: memref<1xi32, #tpu.memory_space<smem>>, %arg2: memref<1xi32, #tpu.memory_space<smem>>) -> (i32, i32) {
    %0 = arith.index_cast %arg0 : i32 to index
    %1 = memref.load %arg2[%0] : memref<1xi32, #tpu.memory_space<smem>>
    %c0_i32 = arith.constant 0 : i32
    %c0_i32_0 = arith.constant 0 : i32
    return %c0_i32, %1 : i32, i32
  }
  func.func @transform_5(%arg0: i32, %arg1: memref<1xi32, #tpu.memory_space<smem>>, %arg2: memref<1xi32, #tpu.memory_space<smem>>) -> (i32, i32) {
    %0 = arith.index_cast %arg0 : i32 to index
    %1 = memref.load %arg1[%0] : memref<1xi32, #tpu.memory_space<smem>>
    %c0_i32 = arith.constant 0 : i32
    %c0_i32_0 = arith.constant 0 : i32
    return %1, %c0_i32 : i32, i32
  }
  func.func @transform_6(%arg0: i32, %arg1: memref<1xi32, #tpu.memory_space<smem>>, %arg2: memref<1xi32, #tpu.memory_space<smem>>) -> (i32, i32) {
    %0 = arith.index_cast %arg0 : i32 to index
    %1 = memref.load %arg2[%0] : memref<1xi32, #tpu.memory_space<smem>>
    %c0_i32 = arith.constant 0 : i32
    %c0_i32_0 = arith.constant 0 : i32
    return %c0_i32, %1 : i32, i32
  }
  func.func @transform_7(%arg0: i32, %arg1: memref<1xi32, #tpu.memory_space<smem>>, %arg2: memref<1xi32, #tpu.memory_space<smem>>) -> (i32, i32) {
    %c0_i32 = arith.constant 0 : i32
    %c0_i32_0 = arith.constant 0 : i32
    %c0_i32_1 = arith.constant 0 : i32
    return %c0_i32, %c0_i32_0 : i32, i32
  }
}

</mosaic_0001>

<llo_original>
// kernel: tpu_custom_call.1
$region0: #{tpu_custom_call.1}
  #allocation0 [shape = 'u32[]', space=smem, size = 0x4, offset = 0x4, fixed_abs, tag = 'smem constant byte address 0x4 - core index']
  #allocation1 [shape = 'u32[144,128]{1,0:T(1,128)}', space=vmem, size = 0x12000, scoped, tag = 'internal scratch']
  #allocation2 [shape = 's32[1]{0}', space=sflag, size = 0x4, scoped, tag = 'scoped memory for tpu_custom_call.1']
  #allocation3 [shape = 's32[1]{0:T(128)S(6)}', space=smem, size = 0x200, scoped, tag = 'prefetched SMEM operand 0']
  #allocation4 [shape = 's32[1]{0:T(128)S(6)}', space=smem, size = 0x200, scoped, tag = 'prefetched SMEM operand 1']
  #allocation5 [shape = 'f32[1]{0:T(128)S(6)}', space=smem, size = 0x200, scoped, tag = 'scoped memory for tpu_custom_call.1']
  %s0 = inlined_call_operand.<no memory space> [shape: s32[1], index: 0, kind: input, shape index: {}]
  %s1 = inlined_call_operand.<no memory space> [shape: s32[1], index: 1, kind: input, shape index: {}]
  %s2 = inlined_call_operand.<no memory space> [shape: f32[1], index: 2, kind: input, shape index: {}]
  %s3 = inlined_call_operand.vmem [shape: f32[16,128], index: 3, kind: input, shape index: {}]
  %s4 = inlined_call_operand.vmem [shape: f32[16,128], index: 4, kind: input, shape index: {}]
  %s5 = inlined_call_operand.vmem [shape: f32[16,1], index: 5, kind: input, shape index: {}]
  %s6 = inlined_call_operand.vmem [shape: f32[1,16], index: 6, kind: input, shape index: {}]
  %s7 = inlined_call_operand.vmem [shape: f32[16,1], index: 7, kind: input, shape index: {}]
  %s8 = inlined_call_operand.vmem [shape: f32[1,16], index: 8, kind: input, shape index: {}]
  %s9 = inlined_call_operand.hbm [shape: f32[1,1], index: 9, kind: output, shape index: {}]
  %s10 = sld [smem:[#allocation0]]
  $region42: #{tpu_custom_call.1} parent=0
    _
  %s12 = ssub.s32 1, %s10
  %s13 = scalar_select 0, %s12, %s10
  %14 = sst [smem:[#allocation3]] %s0
  %15 = sst [smem:[#allocation4]] %s1
  %16 = sst [smem:[#allocation5]] %s2
  $region1: #{tpu_custom_call.1} parent=0
    #allocation6 [shape = 'u8[512]{0}', space=smem, size = 0x200, scoped, tag = 'output window, operand 0, single buffered']
    #allocation7 [shape = 's32[1]{0}', space=sflag, size = 0x4, scoped, tag = 'scoped memory for tpu_custom_call.1']
    %17 = vsyncpa [#allocation7], 0
    // Predicated region
    $region2: #{tpu_custom_call.1} parent=1 // pred_check
      _
    $region3: #{tpu_custom_call.1} parent=1 // pred_check_branch
      %19 = sbr.rel (0) target = $region5
    $region4: #{tpu_custom_call.1} parent=1 // pred_region
      _
    $region5: #{tpu_custom_call.1} parent=1 // pred_fallthru
      _
    // Predicated region
    $region6: #{tpu_custom_call.1} parent=1 // pred_check
      _
    $region7: #{tpu_custom_call.1} parent=1 // pred_check_branch
      %21 = sbr.rel (0) target = $region9
    $region8: #{tpu_custom_call.1} parent=1 // pred_region
      %s22 = sld [smem:[#allocation3]]
      %s23 = smul.u32 2, %s22
      %p24 = scmp.lt.s32.totalorder %s23, 1
      %s25 = scalar_select %p24, %s23, 1
      %s26 = smul.addr %s25, 8
      %s27 = scalar_lea.vmem %s3, %s26
      %s28 = sld [smem:[#allocation3]]
      %s29 = smul.u32 2, %s28
    $region9: #{tpu_custom_call.1} parent=1 // pred_fallthru
      _
    // Predicated region
    $region10: #{tpu_custom_call.1} parent=1 // pred_check
      _
    $region11: #{tpu_custom_call.1} parent=1 // pred_check_branch
      %31 = sbr.rel (0) target = $region13
    $region12: #{tpu_custom_call.1} parent=1 // pred_region
      %s32 = sld [smem:[#allocation4]]
      %s33 = smul.u32 2, %s32
      %p34 = scmp.lt.s32.totalorder %s33, 1
      %s35 = scalar_select %p34, %s33, 1
      %s36 = smul.addr %s35, 8
      %s37 = scalar_lea.vmem %s4, %s36
      %s38 = sld [smem:[#allocation4]]
      %s39 = smul.u32 2, %s38
    $region13: #{tpu_custom_call.1} parent=1 // pred_fallthru
      _
    // Predicated region
    $region14: #{tpu_custom_call.1} parent=1 // pred_check
      _
    $region15: #{tpu_custom_call.1} parent=1 // pred_check_branch
      %41 = sbr.rel (0) target = $region17
    $region16: #{tpu_custom_call.1} parent=1 // pred_region
      %s42 = sld [smem:[#allocation3]]
      %s43 = smul.u32 2, %s42
      %p44 = scmp.lt.s32.totalorder %s43, 1
      %s45 = scalar_select %p44, %s43, 1
      %s46 = smul.addr %s45, 8
      %s47 = scalar_lea.vmem %s5, %s46
      %s48 = sld [smem:[#allocation3]]
      %s49 = smul.u32 2, %s48
    $region17: #{tpu_custom_call.1} parent=1 // pred_fallthru
      _
    // Predicated region
    $region18: #{tpu_custom_call.1} parent=1 // pred_check
      _
    $region19: #{tpu_custom_call.1} parent=1 // pred_check_branch
      %51 = sbr.rel (0) target = $region21
    $region20: #{tpu_custom_call.1} parent=1 // pred_region
      %s52 = sld [smem:[#allocation4]]
      %p53 = scmp.lt.s32.totalorder %s52, 0
      %s54 = scalar_select %p53, %s52, 0
      %s55 = scalar_lea.vmem %s6, %s54
      %s56 = sld [smem:[#allocation4]]
    $region21: #{tpu_custom_call.1} parent=1 // pred_fallthru
      _
    // Predicated region
    $region22: #{tpu_custom_call.1} parent=1 // pred_check
      _
    $region23: #{tpu_custom_call.1} parent=1 // pred_check_branch
      %58 = sbr.rel (0) target = $region25
    $region24: #{tpu_custom_call.1} parent=1 // pred_region
      %s59 = sld [smem:[#allocation3]]
      %s60 = smul.u32 2, %s59
      %p61 = scmp.lt.s32.totalorder %s60, 1
      %s62 = scalar_select %p61, %s60, 1
      %s63 = smul.addr %s62, 8
      %s64 = scalar_lea.vmem %s7, %s63
      %s65 = sld [smem:[#allocation3]]
      %s66 = smul.u32 2, %s65
    $region25: #{tpu_custom_call.1} parent=1 // pred_fallthru
      _
    // Predicated region
    $region26: #{tpu_custom_call.1} parent=1 // pred_check
      _
    $region27: #{tpu_custom_call.1} parent=1 // pred_check_branch
      %68 = sbr.rel (0) target = $region29
    $region28: #{tpu_custom_call.1} parent=1 // pred_region
      %s69 = sld [smem:[#allocation4]]
      %p70 = scmp.lt.s32.totalorder %s69, 0
      %s71 = scalar_select %p70, %s69, 0
      %s72 = scalar_lea.vmem %s8, %s71
      %s73 = sld [smem:[#allocation4]]
    $region29: #{tpu_custom_call.1} parent=1 // pred_fallthru
      _
    %s74 = sld [smem:[#allocation3]]
    %s75 = smul.u32 2, %s74
    %p76 = scmp.lt.s32.totalorder %s75, 1
    %s77 = scalar_select %p76, %s75, 1
    %s78 = smul.addr %s77, 8
    %s79 = scalar_lea.vmem %s3, %s78
    %s80 = sld [smem:[#allocation4]]
    %s81 = smul.u32 2, %s80
    %p82 = scmp.lt.s32.totalorder %s81, 1
    %s83 = scalar_select %p82, %s81, 1
    %s84 = smul.addr %s83, 8
    %s85 = scalar_lea.vmem %s4, %s84
    %s86 = sld [smem:[#allocation3]]
    %s87 = smul.u32 2, %s86
    %p88 = scmp.lt.s32.totalorder %s87, 1
    %s89 = scalar_select %p88, %s87, 1
    %s90 = smul.addr %s89, 8
    %s91 = scalar_lea.vmem %s5, %s90
    %s92 = sld [smem:[#allocation4]]
    %p93 = scmp.lt.s32.totalorder %s92, 0
    %s94 = scalar_select %p93, %s92, 0
    %s95 = scalar_lea.vmem %s6, %s94
    %s96 = sld [smem:[#allocation3]]
    %s97 = smul.u32 2, %s96
    %p98 = scmp.lt.s32.totalorder %s97, 1
    %s99 = scalar_select %p98, %s97, 1
    %s100 = smul.addr %s99, 8
    %s101 = scalar_lea.vmem %s7, %s100
    %s102 = sld [smem:[#allocation4]]
    %p103 = scmp.lt.s32.totalorder %s102, 0
    %s104 = scalar_select %p103, %s102, 0
    %s105 = scalar_lea.vmem %s8, %s104
    %s106 = sld [smem:[#allocation3]]
    %s107 = smul.u32 2, %s106
    %p108 = scmp.lt.s32.totalorder %s107, 1
    %s109 = scalar_select %p108, %s107, 1
    %s110 = smul.addr %s109, 8
    %s111 = scalar_lea.vmem %s3, %s110
    %s112 = sld [smem:[#allocation3]]
    %s113 = smul.u32 2, %s112
    %s114 = sld [smem:[#allocation4]]
    %s115 = smul.u32 2, %s114
    %p116 = scmp.lt.s32.totalorder %s115, 1
    %s117 = scalar_select %p116, %s115, 1
    %s118 = smul.addr %s117, 8
    %s119 = scalar_lea.vmem %s4, %s118
    %s120 = sld [smem:[#allocation4]]
    %s121 = smul.u32 2, %s120
    %s122 = sld [smem:[#allocation3]]
    %s123 = smul.u32 2, %s122
    %p124 = scmp.lt.s32.totalorder %s123, 1
    %s125 = scalar_select %p124, %s123, 1
    %s126 = smul.addr %s125, 8
    %s127 = scalar_lea.vmem %s5, %s126
    %s128 = sld [smem:[#allocation3]]
    %s129 = smul.u32 2, %s128
    %s130 = sld [smem:[#allocation4]]
    %p131 = scmp.lt.s32.totalorder %s130, 0
    %s132 = scalar_select %p131, %s130, 0
    %s133 = scalar_lea.vmem %s6, %s132
    %s134 = sld [smem:[#allocation4]]
    %s135 = sld [smem:[#allocation3]]
    %s136 = smul.u32 2, %s135
    %p137 = scmp.lt.s32.totalorder %s136, 1
    %s138 = scalar_select %p137, %s136, 1
    %s139 = smul.addr %s138, 8
    %s140 = scalar_lea.vmem %s7, %s139
    %s141 = sld [smem:[#allocation3]]
    %s142 = smul.u32 2, %s141
    %s143 = sld [smem:[#allocation4]]
    %p144 = scmp.lt.s32.totalorder %s143, 0
    %s145 = scalar_select %p144, %s143, 0
    %s146 = scalar_lea.vmem %s8, %s145
    %s147 = sld [smem:[#allocation4]]
    %p148 = scmp.eq.s32.totalorder 0, 0
    // Predicated region
    $region30: #{tpu_custom_call.1} parent=1 // pred_check
      %p149 = pneg %p148
    $region31: #{tpu_custom_call.1} parent=1 // pred_check_branch
      %151 = sbr.rel (%p149) target = $region33
    $region32: #{tpu_custom_call.1} parent=1 // pred_region
      %s152 = scalar_lea.smem [#allocation6], 0
      %153 = sst [smem:[%s152]] 0.0
    $region33: #{tpu_custom_call.1} parent=1 // pred_fallthru
      _
    %v154 = vld [vmem:[%s111] sm:$0xff]
    %v155 = vld [vmem:[%s111 + $0x8] sm:$0xff]
    %v156 = vld [vmem:[%s119] sm:$0xff]
    %v157 = vld [vmem:[%s119 + $0x8] sm:$0xff]
    %158 = vmatprep.subr.mxu0 0.0
    %159 = vmatpush1.xpose.msra.mxu0 0.0
    %160 = vmatprep.subr.mxu0 0.0
    %161 = vmatpush1.xpose.msra.mxu0 0.0
    %162 = vmatprep.subr.mxu0 0.0
    %163 = vmatpush1.xpose.msra.mxu0 0.0
    %164 = vmatprep.subr.mxu0 0.0
    %165 = vmatpush1.xpose.msra.mxu0 0.0
    %166 = vmatprep.subr.mxu0 0.0
    %167 = vmatpush1.xpose.msra.mxu0 0.0
    %168 = vmatprep.subr.mxu0 0.0
    %169 = vmatpush1.xpose.msra.mxu0 0.0
    %170 = vmatprep.subr.mxu0 0.0
    %171 = vmatpush1.xpose.msra.mxu0 0.0
    %172 = vmatprep.subr.mxu0 0.0
    %173 = vmatpush1.xpose.msra.mxu0 0.0
    %174 = vmatprep.subr.mxu0 0.0
    %175 = vmatpush1.xpose.msra.mxu0 0.0
    %176 = vmatprep.subr.mxu0 0.0
    %177 = vmatpush1.xpose.msra.mxu0 0.0
    %178 = vmatprep.subr.mxu0 0.0
    %179 = vmatpush1.xpose.msra.mxu0 0.0
    %180 = vmatprep.subr.mxu0 0.0
    %181 = vmatpush1.xpose.msra.mxu0 0.0
    %182 = vmatprep.subr.mxu0 0.0
    %183 = vmatpush1.xpose.msra.mxu0 0.0
    %184 = vmatprep.subr.mxu0 0.0
    %185 = vmatpush1.xpose.msra.mxu0 0.0
    %186 = vmatprep.subr.mxu0 0.0
    %187 = vmatpush1.xpose.msra.mxu0 %v157
    %188 = vmatprep.subr.mxu0 0.0
    %189 = vmatpush1.xpose.msra.mxu0 %v156
    %190 = vmatprep.subr.mxu0 0.0
    %191 = vmatpush2.xpose.msra.mxu0 0.0
    %192 = vmatprep.subr.mxu0 0.0
    %193 = vmatpush2.xpose.msra.mxu0 0.0
    %194 = vmatprep.subr.mxu0 0.0
    %195 = vmatpush2.xpose.msra.mxu0 0.0
    %196 = vmatprep.subr.mxu0 0.0
    %197 = vmatpush2.xpose.msra.mxu0 0.0
    %198 = vmatprep.subr.mxu0 0.0
    %199 = vmatpush2.xpose.msra.mxu0 0.0
    %200 = vmatprep.subr.mxu0 0.0
    %201 = vmatpush2.xpose.msra.mxu0 0.0
    %202 = vmatprep.subr.mxu0 0.0
    %203 = vmatpush2.xpose.msra.mxu0 0.0
    %204 = vmatprep.subr.mxu0 0.0
    %205 = vmatpush2.xpose.msra.mxu0 0.0
    %206 = vmatprep.subr.mxu0 0.0
    %207 = vmatpush2.xpose.msra.mxu0 0.0
    %208 = vmatprep.subr.mxu0 0.0
    %209 = vmatpush2.xpose.msra.mxu0 0.0
    %210 = vmatprep.subr.mxu0 0.0
    %211 = vmatpush2.xpose.msra.mxu0 0.0
    %212 = vmatprep.subr.mxu0 0.0
    %213 = vmatpush2.xpose.msra.mxu0 0.0
    %214 = vmatprep.subr.mxu0 0.0
    %215 = vmatpush2.xpose.msra.mxu0 0.0
    %216 = vmatprep.subr.mxu0 0.0
    %217 = vmatpush2.xpose.msra.mxu0 0.0
    %218 = vmatprep.subr.mxu0 0.0
    %219 = vmatpush2.xpose.msra.mxu0 0.0
    %220 = vmatprep.subr.mxu0 0.0
    %221 = vmatpush2.xpose.msra.mxu0 0.0
    %222 = vmatprep.mubr.f32.mxu0 0.0
    %223 = vmatmul.mubr.f32.gmra.mxu0 %v154
    %v224 = vpop.f32.mrf.mxu0
    %v225 = vadd.f32 0.0, %v224
    %v226 = vpop.f32.mrf.mxu0
    %227 = vmatprep.mubr.f32.mxu0 0.0
    %228 = vmatmul.mubr.f32.gmra.mxu0 %v155
    %v229 = vpop.f32.mrf.mxu0
    %v230 = vadd.f32 0.0, %v229
    %v231 = vpop.f32.mrf.mxu0
    %232 = vdwg.mxu0
    %v233 = vld [vmem:[%s127] sm:$0xff]
    %v234 = vld [vmem:[%s127 + $0x8] sm:$0xff]
    %v235 = vld [vmem:[%s133] sm:$0x1]
    %237 = vset.pattern.permute.xlu0 0
    %238 = vperm.xlu0 %237, %v233
    %v239 = vpop.permute.xlu0 %238
    %242 = vset.pattern.permute.xlu0 0
    %243 = vperm.xlu0 %242, %v234
    %v244 = vpop.permute.xlu0 %243
    %v247 = vlaneseq
    %v248 = vshrl.u32 %v247, 7
    %v249 = vsub.s32 0, %v248
    %v250 = vrot.slane %v235, %v249
    %v252 = vadd.f32 %v239, %v250
    %v253 = vadd.f32 %v244, %v250
    %v254 = vmul.f32 %v225, 2.0
    %v255 = vmul.f32 %v230, 2.0
    %v256 = vsub.f32 %v252, %v254
    %v257 = vsub.f32 %v253, %v255
    %v258 = vmax.f32 %v256, 0.0
    %v259 = vmax.f32 %v257, 0.0
    %s260 = sld [smem:[#allocation5]]
    %v261 = vstv %s260
    %v262 = vmul.f32 %v258, %v261
    %v263 = vmul.f32 %v259, %v261
    %v264 = vmul.f32 %v262, 1.442695
    %v265 = vpow.pop %v264
    %v266 = vmul.f32 %v263, 1.442695
    %v267 = vpow.pop %v266
    %v268 = vmul.f32 %v265, %v265
    %v269 = vmul.f32 %v267, %v267
    %v270 = vmul.f32 %v268, %v268
    %v271 = vmul.f32 %v269, %v269
    %v272 = vmul.f32 %v270, %v270
    %v273 = vmul.f32 %v271, %v271
    %v274 = vmul.f32 %v272, %v272
    %v275 = vmul.f32 %v273, %v273
    %v276 = vadd.f32 %v265, %v268
    %v277 = vadd.f32 %v267, %v269
    %v278 = vadd.f32 %v276, %v270
    %v279 = vadd.f32 %v277, %v271
    %v280 = vadd.f32 %v278, %v272
    %v281 = vadd.f32 %v279, %v273
    %v282 = vadd.f32 %v280, %v274
    %v283 = vadd.f32 %v281, %v275
    %v284 = vld [vmem:[%s146] sm:$0x1]
    %v286 = vlaneseq
    %v287 = vshrl.u32 %v286, 7
    %v288 = vsub.s32 0, %v287
    %v289 = vrot.slane %v284, %v288
    %v291 = vmul.f32 %v282, %v289
    %v292 = vmul.f32 %v283, %v289
    %vm293 = vcmask 130048
    %v294 = vsel %vm293, %v291, 0.0
    %295 = vadd.xlane.f32.xlu0 %v294
    %v296 = vpop.xlane.xlu0 %295
    %v297 = vsel %vm293, %v292, 0.0
    %298 = vadd.xlane.f32.xlu0 %v297
    %v299 = vpop.xlane.xlu0 %298
    %v300 = vld [vmem:[%s140] sm:$0xff]
    %v301 = vld [vmem:[%s140 + $0x8] sm:$0xff]
    %v302 = vmul.f32 %v296, %v300
    %v303 = vmul.f32 %v299, %v301
    %vm304 = vcmask 7168
    %v305 = vsel %vm304, %v302, 0.0
    %v306 = vsel %vm304, %v303, 0.0
    %v307 = vadd.f32 %v305, %v306
    %308 = vadd.xlane.f32.xlu0 %v307
    %v309 = vpop.xlane.xlu0 %308
    %v310 = vrot.slane %v309, 4
    %v311 = vadd.f32 %v309, %v310
    %v312 = vrot.slane %v311, 2
    %v313 = vadd.f32 %v311, %v312
    %v314 = vrot.slane %v313, 1
    %v315 = vadd.f32 %v313, %v314
    %s316 = vtos %v315
    %s317 = sld [smem:[#allocation3]]
    %s318 = sld [smem:[#allocation4]]
    %p319 = scmp.eq.s32.totalorder %s317, %s318
    %s320 = scalar_select %p319, 1.0, 2.0
    %s321 = sld [smem:[#allocation6]]
    %s322 = smul.f32 %s316, %s320
    %s323 = sadd.f32 %s321, %s322
    %s324 = scalar_lea.smem [#allocation6], 0
    %325 = sst [smem:[%s324]] %s323
    // Predicated region
    $region34: #{tpu_custom_call.1} parent=1 // pred_check
      _
    $region35: #{tpu_custom_call.1} parent=1 // pred_check_branch
      %327 = sbr.rel (0) target = $region37
    $region36: #{tpu_custom_call.1} parent=1 // pred_region
      %s329 = ssub.s32 16, 16
      %330 = vsyncadd [#allocation7], %s329
      %333 = dma.smem_to_hbm [#allocation6], 16, %s9, [#allocation7]
    $region37: #{tpu_custom_call.1} parent=1 // pred_fallthru
      _
    // Predicated region
    $region38: #{tpu_custom_call.1} parent=1 // pred_check
      _
    $region39: #{tpu_custom_call.1} parent=1 // pred_check_branch
      %335 = sbr.rel (0) target = $region41
    $region40: #{tpu_custom_call.1} parent=1 // pred_region
      %336 = dma.done [#allocation7], 16
    $region41: #{tpu_custom_call.1} parent=1 // pred_fallthru
      _
    %337 = sfence
    %338 = vsyncpa [#allocation7], 1

</llo_original>
